<compile_context>
chip_gen: v6e
topology: v6e:2x2x1
jax: 0.10.0
libtpu: 0.0.40
codegen_flags: <defaults>
</compile_context>

<pallas_src>
import functools

import jax
import jax.numpy as jnp
from jax.experimental import pallas as pl
from jax.experimental.pallas import tpu as pltpu


def _round_up(x, m):
    return ((x + m - 1) // m) * m


def _mlp_value_kernel(x_ref, w1_ref, b1_ref, w2_ref, b2_ref, w3_ref, b3_ref, o_ref):
    # x_ref : (tb, obs_dim)   natural HBM layout tile (no wrapper pad/transpose)
    # w1_ref: (H1, obs_dim)   b1_ref: (H1, 1)
    # w2_ref: (H2, H1)        b2_ref: (H2, 1)
    # w3_ref: (H2, 1)         b3_ref: (1, 1) in SMEM (scalar)
    # o_ref : (1, tb)         lane-dense output block (batch on lanes)

    # Put batch on the lane axis with a small in-VMEM transpose (XLU slot; free
    # next to the EUP tanh / MXU work).
    x_t = x_ref[...].T                                              # (obs_dim, tb)

    # Hidden layer 1: (H1, tb), f32 accumulate, f32 bias + tanh (v5e-safe).
    h1 = jnp.tanh(
        jnp.dot(w1_ref[...], x_t, preferred_element_type=jnp.float32) + b1_ref[...]
    )

    # Hidden layer 2: (H2, tb).
    h2 = jnp.tanh(
        jnp.dot(w2_ref[...], h1, preferred_element_type=jnp.float32) + b2_ref[...]
    )

    # Output layer (out_features = 1): VPU multiply + sublane reduction instead
    # of a 1-wide MXU pass.  (H2, tb) * (H2, 1) -> sum over H2 -> (1, tb).
    v = jnp.sum(h2 * w3_ref[...], axis=0, keepdims=True) + b3_ref[0, 0]
    o_ref[...] = v.astype(o_ref.dtype)


@functools.partial(jax.jit, static_argnames=("block_batch", "core_parallel"))
def mlp_value_forward(obs, params, *, block_batch=2048, core_parallel=False):
    """Fused MLP value-function forward.

    obs    : (batch, obs_dim) f32.
    params : (w1, b1, w2, b2, w3, b3) already in kernel layout (prepared once,
             outside the per-call path):
               w1: (H1, obs_dim)  b1: (H1, 1)
               w2: (H2, H1)       b2: (H2, 1)
               w3: (H2, 1)        b3: (1, 1)
    Returns value estimates of shape (batch,).

    core_parallel=True uses CORE_PARALLEL on the batch grid axis so v7x's two
    TensorCores split the batch (leave False on single-core v5e/v6e).
    """
    w1, b1, w2, b2, w3, b3 = params
    batch, obs_dim = obs.shape
    h1_dim = w1.shape[0]
    h2_dim = w2.shape[0]

    # Batch tile. Single full-array tile when everything fits (no alignment
    # constraints then); otherwise a 128-multiple tile on the lane axis with the
    # ragged last block masked by Pallas.  VMEM footprint ~460*tb bytes, so even
    # tb=2048 (~1 MB) is far below v5e's 16 MiB scoped-VMEM default.
    if batch <= block_batch:
        tb = batch
    else:
        tb = _round_up(block_batch, 128)
    grid = (pl.cdiv(batch, tb),)

    def _resident(shape):
        # Constant index_map -> weights/biases stay resident in VMEM across grid steps.
        return pl.BlockSpec(shape, lambda i: (0, 0))

    batch_sem = pltpu.CORE_PARALLEL if core_parallel else pltpu.PARALLEL

    out = pl.pallas_call(
        _mlp_value_kernel,
        out_shape=jax.ShapeDtypeStruct((1, batch), jnp.float32),
        grid=grid,
        in_specs=[
            pl.BlockSpec((tb, obs_dim), lambda i: (i, 0)),   # obs tile, natural layout
            _resident((h1_dim, obs_dim)),
            _resident((h1_dim, 1)),
            _resident((h2_dim, h1_dim)),
            _resident((h2_dim, 1)),
            _resident((h2_dim, 1)),
            pl.BlockSpec(memory_space=pltpu.MemorySpace.SMEM),   # b3 scalar
        ],
        out_specs=pl.BlockSpec((1, tb), lambda i: (0, i)),        # lane-dense output
        compiler_params=pltpu.CompilerParams(
            dimension_semantics=(batch_sem,),
        ),
    )(obs, w1, b1, w2, b2, w3, b3)

    # torch.squeeze(..., -1): drop the size-1 feature dim.
    return out[0]


def init_params(key, obs_dim, hidden_sizes):
    """Deterministic init mimicking nn.Linear's U(-1/sqrt(fan_in), 1/sqrt(fan_in)),
    stored directly in kernel layout so no per-call layout work is needed:
      hidden weights: (out, in); biases: (out, 1); final head weight: (in, 1)."""
    sizes = [obs_dim] + list(hidden_sizes) + [1]
    n_layers = len(sizes) - 1
    params = []
    for j in range(n_layers):
        fan_in, fan_out = sizes[j], sizes[j + 1]
        key, kw, kb = jax.random.split(key, 3)
        bound = 1.0 / jnp.sqrt(jnp.float32(fan_in))
        if j < n_layers - 1:
            w = jax.random.uniform(kw, (fan_out, fan_in), jnp.float32, -bound, bound)
        else:  # output head stored as (in, 1) so it broadcasts against (H2, tb)
            w = jax.random.uniform(kw, (fan_in, fan_out), jnp.float32, -bound, bound)
        b = jax.random.uniform(kb, (fan_out, 1), jnp.float32, -bound, bound)
        params += [w, b]
    return tuple(params)


def _reference(obs, params):
    w1, b1, w2, b2, w3, b3 = params
    h = jnp.tanh(obs @ w1.T + b1[:, 0])
    h = jnp.tanh(h @ w2.T + b2[:, 0])
    return jnp.squeeze(h @ w3 + b3[:, 0], axis=-1)


if __name__ == "__main__":
    batch = 8
    obs_dim = 16
    hidden_sizes = (32, 32)

    key = jax.random.PRNGKey(0)
    key, k_obs = jax.random.split(key)
    obs = jax.random.normal(k_obs, (batch, obs_dim), dtype=jnp.float32)
    params = init_params(key, obs_dim, hidden_sizes)

    # Small batch: single full-array tile, f32 path (strict check).
    v = mlp_value_forward(obs, params)
    jax.block_until_ready(v)
    v_ref = _reference(obs, params)
    assert v.shape == (batch,)
    assert jnp.allclose(v, v_ref, atol=1e-5), "f32 path mismatch vs. reference"

    # Larger, non-multiple-of-128 batch exercising a multi-tile grid with a
    # ragged (masked) last block — no wrapper-side padding or transpose.
    key, k_obs2 = jax.random.split(key)
    obs_big = jax.random.normal(k_obs2, (300, obs_dim), dtype=jnp.float32)
    v_big = mlp_value_forward(obs_big, params, block_batch=128)
    jax.block_until_ready(v_big)
    assert v_big.shape == (300,)
    assert jnp.allclose(v_big, _reference(obs_big, params), atol=1e-5), \
        "multi-tile ragged path mismatch vs. reference"

    print("KERNEL_OK")
</pallas_src>

<mosaic_0001>
module attributes {stable_mosaic.version = 11 : i64} {
  func.func @_mlp_value_kernel(%arg0: i32, %arg1: memref<8x16xf32, #tpu.memory_space<vmem>>, %arg2: memref<32x16xf32, #tpu.memory_space<vmem>>, %arg3: memref<32x1xf32, #tpu.memory_space<vmem>>, %arg4: memref<32x32xf32, #tpu.memory_space<vmem>>, %arg5: memref<32x1xf32, #tpu.memory_space<vmem>>, %arg6: memref<32x1xf32, #tpu.memory_space<vmem>>, %arg7: memref<1x1xf32, #tpu.memory_space<smem>>, %arg8: memref<1x8xf32, #tpu.memory_space<vmem>>) attributes {dimension_semantics = [#tpu.dimension_semantics<parallel>], iteration_bounds = array<i64: 1>, scalar_prefetch = 0 : i64, scratch_operands = 0 : i64, tpu.core_type = #tpu.core_type<tc>, window_params = [{transform_indices = @transform_0, window_bounds = array<i64: 8, 16>}, {pipeline_mode = #tpu.pipeline_mode<synchronous>, transform_indices = @transform_1, window_bounds = array<i64: 32, 16>}, {pipeline_mode = #tpu.pipeline_mode<synchronous>, transform_indices = @transform_2, window_bounds = array<i64: 32, 1>}, {pipeline_mode = #tpu.pipeline_mode<synchronous>, transform_indices = @transform_3, window_bounds = array<i64: 32, 32>}, {pipeline_mode = #tpu.pipeline_mode<synchronous>, transform_indices = @transform_4, window_bounds = array<i64: 32, 1>}, {pipeline_mode = #tpu.pipeline_mode<synchronous>, transform_indices = @transform_5, window_bounds = array<i64: 32, 1>}, {transform_indices = @transform_6, window_bounds = array<i64: 1, 1>}, {transform_indices = @transform_7, window_bounds = array<i64: 1, 8>}]} {
    %c0 = arith.constant 0 : index
    %c0_0 = arith.constant 0 : index
    %0 = vector.load %arg1[%c0, %c0_0] : memref<8x16xf32, #tpu.memory_space<vmem>>, vector<8x16xf32>
    %1 = tpu.transpose %0, [1, 0] : vector<8x16xf32> -> vector<16x8xf32>
    %c0_1 = arith.constant 0 : index
    %c0_2 = arith.constant 0 : index
    %2 = vector.load %arg2[%c0_1, %c0_2] : memref<32x16xf32, #tpu.memory_space<vmem>>, vector<32x16xf32>
    %cst = arith.constant dense<0.000000e+00> : vector<32x8xf32>
    %3 = tpu.matmul %2, %1, %cst {dimension_numbers = #tpu.dot_dimension_numbers<[1], [0], [0], [1], [0, 0, 1, 1], [], []>} : vector<32x16xf32>, vector<16x8xf32>, vector<32x8xf32> -> vector<32x8xf32>
    %c0_3 = arith.constant 0 : index
    %c0_4 = arith.constant 0 : index
    %4 = vector.load %arg3[%c0_3, %c0_4] : memref<32x1xf32, #tpu.memory_space<vmem>>, vector<32x1xf32>
    %5 = vector.broadcast %4 : vector<32x1xf32> to vector<32x8xf32>
    %6 = arith.addf %3, %5 : vector<32x8xf32>
    %7 = math.tanh %6 : vector<32x8xf32>
    %c0_5 = arith.constant 0 : index
    %c0_6 = arith.constant 0 : index
    %8 = vector.load %arg4[%c0_5, %c0_6] : memref<32x32xf32, #tpu.memory_space<vmem>>, vector<32x32xf32>
    %cst_7 = arith.constant dense<0.000000e+00> : vector<32x8xf32>
    %9 = tpu.matmul %8, %7, %cst_7 {dimension_numbers = #tpu.dot_dimension_numbers<[1], [0], [0], [1], [0, 0, 1, 1], [], []>} : vector<32x32xf32>, vector<32x8xf32>, vector<32x8xf32> -> vector<32x8xf32>
    %c0_8 = arith.constant 0 : index
    %c0_9 = arith.constant 0 : index
    %10 = vector.load %arg5[%c0_8, %c0_9] : memref<32x1xf32, #tpu.memory_space<vmem>>, vector<32x1xf32>
    %11 = vector.broadcast %10 : vector<32x1xf32> to vector<32x8xf32>
    %12 = arith.addf %9, %11 : vector<32x8xf32>
    %13 = math.tanh %12 : vector<32x8xf32>
    %c0_10 = arith.constant 0 : index
    %c0_11 = arith.constant 0 : index
    %14 = vector.load %arg6[%c0_10, %c0_11] : memref<32x1xf32, #tpu.memory_space<vmem>>, vector<32x1xf32>
    %15 = vector.broadcast %14 : vector<32x1xf32> to vector<32x8xf32>
    %16 = arith.mulf %13, %15 : vector<32x8xf32>
    %cst_12 = arith.constant dense<0.000000e+00> : vector<8xf32>
    %17 = vector.multi_reduction <add>, %16, %cst_12 [0] : vector<32x8xf32> to vector<8xf32>
    %18 = vector.shape_cast %17 : vector<8xf32> to vector<1x8xf32>
    %c0_13 = arith.constant 0 : index
    %c0_14 = arith.constant 0 : index
    %19 = memref.load %arg7[%c0_13, %c0_14] : memref<1x1xf32, #tpu.memory_space<smem>>
    %20 = vector.broadcast %19 : f32 to vector<1x8xf32>
    %21 = arith.addf %18, %20 : vector<1x8xf32>
    %c0_15 = arith.constant 0 : index
    %c0_16 = arith.constant 0 : index
    %22 = vector.load %arg8[%c0_15, %c0_16] : memref<1x8xf32, #tpu.memory_space<vmem>>, vector<1x8xf32>
    tpu.vector_store %arg8[%c0_15, %c0_16], %21 {strides = array<i32>} : memref<1x8xf32, #tpu.memory_space<vmem>>, vector<1x8xf32>,
    return
  }
  func.func @transform_0(%arg0: i32) -> (i32, i32) {
    %c0_i32 = arith.constant 0 : i32
    %c0_i32_0 = arith.constant 0 : i32
    return %arg0, %c0_i32 : i32, i32
  }
  func.func @transform_1(%arg0: i32) -> (i32, i32) {
    %c0_i32 = arith.constant 0 : i32
    %c0_i32_0 = arith.constant 0 : i32
    %c0_i32_1 = arith.constant 0 : i32
    return %c0_i32, %c0_i32_0 : i32, i32
  }
  func.func @transform_2(%arg0: i32) -> (i32, i32) {
    %c0_i32 = arith.constant 0 : i32
    %c0_i32_0 = arith.constant 0 : i32
    %c0_i32_1 = arith.constant 0 : i32
    return %c0_i32, %c0_i32_0 : i32, i32
  }
  func.func @transform_3(%arg0: i32) -> (i32, i32) {
    %c0_i32 = arith.constant 0 : i32
    %c0_i32_0 = arith.constant 0 : i32
    %c0_i32_1 = arith.constant 0 : i32
    return %c0_i32, %c0_i32_0 : i32, i32
  }
  func.func @transform_4(%arg0: i32) -> (i32, i32) {
    %c0_i32 = arith.constant 0 : i32
    %c0_i32_0 = arith.constant 0 : i32
    %c0_i32_1 = arith.constant 0 : i32
    return %c0_i32, %c0_i32_0 : i32, i32
  }
  func.func @transform_5(%arg0: i32) -> (i32, i32) {
    %c0_i32 = arith.constant 0 : i32
    %c0_i32_0 = arith.constant 0 : i32
    %c0_i32_1 = arith.constant 0 : i32
    return %c0_i32, %c0_i32_0 : i32, i32
  }
  func.func @transform_6(%arg0: i32) -> (i32, i32) {
    %c0_i32 = arith.constant 0 : i32
    %c0_i32_0 = arith.constant 0 : i32
    %c0_i32_1 = arith.constant 0 : i32
    return %c0_i32, %c0_i32_0 : i32, i32
  }
  func.func @transform_7(%arg0: i32) -> (i32, i32) {
    %c0_i32 = arith.constant 0 : i32
    %c0_i32_0 = arith.constant 0 : i32
    return %c0_i32, %arg0 : i32, i32
  }
}

</mosaic_0001>

<llo_original>
// kernel: mlp_value_forward.1
$region0: #{mlp_value_forward.1}
  #allocation0 [shape = 'u32[]', space=smem, size = 0x4, offset = 0x4, fixed_abs, tag = 'smem constant byte address 0x4 - core index']
  #allocation1 [shape = 'u32[144,128]{1,0:T(1,128)}', space=vmem, size = 0x12000, scoped, tag = 'internal scratch']
  #allocation2 [shape = 'f32[1,1]{1,0:T(1,128)S(6)}', space=smem, size = 0x200, scoped, tag = 'scoped memory for mlp_value_forward.1']
  %s0 = inlined_call_operand.vmem [shape: f32[8,16], index: 0, kind: input, shape index: {}]
  %s1 = inlined_call_operand.vmem [shape: f32[32,16], index: 1, kind: input, shape index: {}]
  %s2 = inlined_call_operand.vmem [shape: f32[32,1], index: 2, kind: input, shape index: {}]
  %s3 = inlined_call_operand.vmem [shape: f32[32,32], index: 3, kind: input, shape index: {}]
  %s4 = inlined_call_operand.vmem [shape: f32[32,1], index: 4, kind: input, shape index: {}]
  %s5 = inlined_call_operand.vmem [shape: f32[32,1], index: 5, kind: input, shape index: {}]
  %s6 = inlined_call_operand.<no memory space> [shape: f32[1,1], index: 6, kind: input, shape index: {}]
  %s7 = inlined_call_operand.hbm [shape: f32[1,8], index: 7, kind: output, shape index: {}]
  %s8 = sld [smem:[#allocation0]]
  $region38: #{mlp_value_forward.1} parent=0
    _
  %s10 = ssub.s32 1, %s8
  %s11 = scalar_select 0, %s10, %s8
  %12 = sst [smem:[#allocation2]] %s6
  $region1: #{mlp_value_forward.1} parent=0
    #allocation3 [shape = 'u8[512]{0}', space=vmem, size = 0x400, scoped, tag = 'output window, operand 0, single buffered']
    #allocation4 [shape = 's32[1]{0}', space=sflag, size = 0x4, scoped, tag = 'scoped memory for mlp_value_forward.1']
    %13 = vsyncpa [#allocation4], 0
    // Predicated region
    $region2: #{mlp_value_forward.1} parent=1 // pred_check
      _
    $region3: #{mlp_value_forward.1} parent=1 // pred_check_branch
      %15 = sbr.rel (0) target = $region5
    $region4: #{mlp_value_forward.1} parent=1 // pred_region
      _
    $region5: #{mlp_value_forward.1} parent=1 // pred_fallthru
      _
    // Predicated region
    $region6: #{mlp_value_forward.1} parent=1 // pred_check
      _
    $region7: #{mlp_value_forward.1} parent=1 // pred_check_branch
      %17 = sbr.rel (0) target = $region9
    $region8: #{mlp_value_forward.1} parent=1 // pred_region
      _
    $region9: #{mlp_value_forward.1} parent=1 // pred_fallthru
      _
    // Predicated region
    $region10: #{mlp_value_forward.1} parent=1 // pred_check
      _
    $region11: #{mlp_value_forward.1} parent=1 // pred_check_branch
      %19 = sbr.rel (0) target = $region13
    $region12: #{mlp_value_forward.1} parent=1 // pred_region
      _
    $region13: #{mlp_value_forward.1} parent=1 // pred_fallthru
      _
    // Predicated region
    $region14: #{mlp_value_forward.1} parent=1 // pred_check
      _
    $region15: #{mlp_value_forward.1} parent=1 // pred_check_branch
      %21 = sbr.rel (0) target = $region17
    $region16: #{mlp_value_forward.1} parent=1 // pred_region
      _
    $region17: #{mlp_value_forward.1} parent=1 // pred_fallthru
      _
    // Predicated region
    $region18: #{mlp_value_forward.1} parent=1 // pred_check
      _
    $region19: #{mlp_value_forward.1} parent=1 // pred_check_branch
      %23 = sbr.rel (0) target = $region21
    $region20: #{mlp_value_forward.1} parent=1 // pred_region
      _
    $region21: #{mlp_value_forward.1} parent=1 // pred_fallthru
      _
    // Predicated region
    $region22: #{mlp_value_forward.1} parent=1 // pred_check
      _
    $region23: #{mlp_value_forward.1} parent=1 // pred_check_branch
      %25 = sbr.rel (0) target = $region25
    $region24: #{mlp_value_forward.1} parent=1 // pred_region
      _
    $region25: #{mlp_value_forward.1} parent=1 // pred_fallthru
      _
    // Predicated region
    $region26: #{mlp_value_forward.1} parent=1 // pred_check
      _
    $region27: #{mlp_value_forward.1} parent=1 // pred_check_branch
      %27 = sbr.rel (0) target = $region29
    $region28: #{mlp_value_forward.1} parent=1 // pred_region
      _
    $region29: #{mlp_value_forward.1} parent=1 // pred_fallthru
      _
    %v28 = vld [vmem:[%s0] sm:$0xff]
    %v29 = vld [vmem:[%s1] sm:$0xff]
    %v30 = vld [vmem:[%s1 + $0x8] sm:$0xff]
    %v31 = vld [vmem:[%s1 + $0x10] sm:$0xff]
    %v32 = vld [vmem:[%s1 + $0x18] sm:$0xff]
    %v33 = vld [vmem:[%s2] sm:$0xff]
    %v34 = vld [vmem:[%s2 + $0x8] sm:$0xff]
    %v35 = vld [vmem:[%s2 + $0x10] sm:$0xff]
    %v36 = vld [vmem:[%s2 + $0x18] sm:$0xff]
    %38 = vset.pattern.permute.xlu0 0
    %39 = vperm.xlu0 %38, %v33
    %v40 = vpop.permute.xlu0 %39
    %43 = vset.pattern.permute.xlu0 0
    %44 = vperm.xlu0 %43, %v34
    %v45 = vpop.permute.xlu0 %44
    %48 = vset.pattern.permute.xlu0 0
    %49 = vperm.xlu0 %48, %v35
    %v50 = vpop.permute.xlu0 %49
    %53 = vset.pattern.permute.xlu0 0
    %54 = vperm.xlu0 %53, %v36
    %v55 = vpop.permute.xlu0 %54
    %vm57 = vcmask 130048
    %v59 = vsel %vm57, %v29, 0
    %v62 = vsel %vm57, %v30, 0
    %v65 = vsel %vm57, %v31, 0
    %v68 = vsel %vm57, %v32, 0
    %v71 = vsel %vm57, %v28, 0
    %73 = vmatprep.subr.mxu0 0.0
    %74 = vmatpush1.xpose.msra.mxu0 0.0
    %75 = vmatprep.subr.mxu0 0.0
    %76 = vmatpush1.xpose.msra.mxu0 0.0
    %77 = vmatprep.subr.mxu0 0.0
    %78 = vmatpush1.xpose.msra.mxu0 0.0
    %79 = vmatprep.subr.mxu0 0.0
    %80 = vmatpush1.xpose.msra.mxu0 0.0
    %81 = vmatprep.subr.mxu0 0.0
    %82 = vmatpush1.xpose.msra.mxu0 0.0
    %83 = vmatprep.subr.mxu0 0.0
    %84 = vmatpush1.xpose.msra.mxu0 0.0
    %85 = vmatprep.subr.mxu0 0.0
    %86 = vmatpush1.xpose.msra.mxu0 0.0
    %87 = vmatprep.subr.mxu0 0.0
    %88 = vmatpush1.xpose.msra.mxu0 0.0
    %89 = vmatprep.subr.mxu0 0.0
    %90 = vmatpush1.xpose.msra.mxu0 0.0
    %91 = vmatprep.subr.mxu0 0.0
    %92 = vmatpush1.xpose.msra.mxu0 0.0
    %93 = vmatprep.subr.mxu0 0.0
    %94 = vmatpush1.xpose.msra.mxu0 0.0
    %95 = vmatprep.subr.mxu0 0.0
    %96 = vmatpush1.xpose.msra.mxu0 0.0
    %97 = vmatprep.subr.mxu0 0.0
    %98 = vmatpush1.xpose.msra.mxu0 0.0
    %99 = vmatprep.subr.mxu0 0.0
    %100 = vmatpush1.xpose.msra.mxu0 0.0
    %101 = vmatprep.subr.mxu0 0.0
    %102 = vmatpush1.xpose.msra.mxu0 0.0
    %103 = vmatprep.subr.mxu0 0.0
    %104 = vmatpush1.xpose.msra.mxu0 %v71
    %105 = vmatprep.subr.mxu0 0.0
    %106 = vmatpush2.xpose.msra.mxu0 0.0
    %107 = vmatprep.subr.mxu0 0.0
    %108 = vmatpush2.xpose.msra.mxu0 0.0
    %109 = vmatprep.subr.mxu0 0.0
    %110 = vmatpush2.xpose.msra.mxu0 0.0
    %111 = vmatprep.subr.mxu0 0.0
    %112 = vmatpush2.xpose.msra.mxu0 0.0
    %113 = vmatprep.subr.mxu0 0.0
    %114 = vmatpush2.xpose.msra.mxu0 0.0
    %115 = vmatprep.subr.mxu0 0.0
    %116 = vmatpush2.xpose.msra.mxu0 0.0
    %117 = vmatprep.subr.mxu0 0.0
    %118 = vmatpush2.xpose.msra.mxu0 0.0
    %119 = vmatprep.subr.mxu0 0.0
    %120 = vmatpush2.xpose.msra.mxu0 0.0
    %121 = vmatprep.subr.mxu0 0.0
    %122 = vmatpush2.xpose.msra.mxu0 0.0
    %123 = vmatprep.subr.mxu0 0.0
    %124 = vmatpush2.xpose.msra.mxu0 0.0
    %125 = vmatprep.subr.mxu0 0.0
    %126 = vmatpush2.xpose.msra.mxu0 0.0
    %127 = vmatprep.subr.mxu0 0.0
    %128 = vmatpush2.xpose.msra.mxu0 0.0
    %129 = vmatprep.subr.mxu0 0.0
    %130 = vmatpush2.xpose.msra.mxu0 0.0
    %131 = vmatprep.subr.mxu0 0.0
    %132 = vmatpush2.xpose.msra.mxu0 0.0
    %133 = vmatprep.subr.mxu0 0.0
    %134 = vmatpush2.xpose.msra.mxu0 0.0
    %135 = vmatprep.subr.mxu0 0.0
    %136 = vmatpush2.xpose.msra.mxu0 0.0
    %137 = vmatprep.mubr.f32.mxu0 0.0
    %138 = vmatmul.mubr.f32.gmra.mxu0 %v59
    %v139 = vpop.f32.mrf.mxu0
    %v140 = vadd.f32 %v40, %v139
    %v141 = vpop.f32.mrf.mxu0
    %142 = vmatprep.mubr.f32.mxu0 0.0
    %143 = vmatmul.mubr.f32.gmra.mxu0 %v62
    %v144 = vpop.f32.mrf.mxu0
    %v145 = vadd.f32 %v45, %v144
    %v146 = vpop.f32.mrf.mxu0
    %147 = vmatprep.mubr.f32.mxu0 0.0
    %148 = vmatmul.mubr.f32.gmra.mxu0 %v65
    %v149 = vpop.f32.mrf.mxu0
    %v150 = vadd.f32 %v50, %v149
    %v151 = vpop.f32.mrf.mxu0
    %152 = vmatprep.mubr.f32.mxu0 0.0
    %153 = vmatmul.mubr.f32.gmra.mxu0 %v68
    %v154 = vpop.f32.mrf.mxu0
    %v155 = vadd.f32 %v55, %v154
    %v156 = vpop.f32.mrf.mxu0
    %157 = vdwg.mxu0
    %v158 = vtanh.pop %v140
    %v159 = vtanh.pop %v145
    %v160 = vtanh.pop %v150
    %v161 = vtanh.pop %v155
    %v162 = vld [vmem:[%s3] sm:$0xff]
    %v163 = vld [vmem:[%s3 + $0x8] sm:$0xff]
    %v164 = vld [vmem:[%s3 + $0x10] sm:$0xff]
    %v165 = vld [vmem:[%s3 + $0x18] sm:$0xff]
    %v166 = vld [vmem:[%s4] sm:$0xff]
    %v167 = vld [vmem:[%s4 + $0x8] sm:$0xff]
    %v168 = vld [vmem:[%s4 + $0x10] sm:$0xff]
    %v169 = vld [vmem:[%s4 + $0x18] sm:$0xff]
    %171 = vset.pattern.permute.xlu0 0
    %172 = vperm.xlu0 %171, %v166
    %v173 = vpop.permute.xlu0 %172
    %176 = vset.pattern.permute.xlu0 0
    %177 = vperm.xlu0 %176, %v167
    %v178 = vpop.permute.xlu0 %177
    %181 = vset.pattern.permute.xlu0 0
    %182 = vperm.xlu0 %181, %v168
    %v183 = vpop.permute.xlu0 %182
    %186 = vset.pattern.permute.xlu0 0
    %187 = vperm.xlu0 %186, %v169
    %v188 = vpop.permute.xlu0 %187
    %vm190 = vcmask 261120
    %v192 = vsel %vm190, %v162, 0
    %v195 = vsel %vm190, %v163, 0
    %v198 = vsel %vm190, %v164, 0
    %v201 = vsel %vm190, %v165, 0
    %203 = vmatprep.subr.mxu0 0.0
    %204 = vmatpush1.msra.mxu0 0.0
    %205 = vmatprep.subr.mxu0 0.0
    %206 = vmatpush1.msra.mxu0 0.0
    %207 = vmatprep.subr.mxu0 0.0
    %208 = vmatpush1.msra.mxu0 0.0
    %209 = vmatprep.subr.mxu0 0.0
    %210 = vmatpush1.msra.mxu0 0.0
    %211 = vmatprep.subr.mxu0 0.0
    %212 = vmatpush1.msra.mxu0 0.0
    %213 = vmatprep.subr.mxu0 0.0
    %214 = vmatpush1.msra.mxu0 0.0
    %215 = vmatprep.subr.mxu0 0.0
    %216 = vmatpush1.msra.mxu0 0.0
    %217 = vmatprep.subr.mxu0 0.0
    %218 = vmatpush1.msra.mxu0 0.0
    %219 = vmatprep.subr.mxu0 0.0
    %220 = vmatpush1.msra.mxu0 0.0
    %221 = vmatprep.subr.mxu0 0.0
    %222 = vmatpush1.msra.mxu0 0.0
    %223 = vmatprep.subr.mxu0 0.0
    %224 = vmatpush1.msra.mxu0 0.0
    %225 = vmatprep.subr.mxu0 0.0
    %226 = vmatpush1.msra.mxu0 0.0
    %227 = vmatprep.subr.mxu0 0.0
    %228 = vmatpush1.msra.mxu0 %v161
    %229 = vmatprep.subr.mxu0 0.0
    %230 = vmatpush1.msra.mxu0 %v160
    %231 = vmatprep.subr.mxu0 0.0
    %232 = vmatpush1.msra.mxu0 %v159
    %233 = vmatprep.subr.mxu0 0.0
    %234 = vmatpush1.msra.mxu0 %v158
    %235 = vmatprep.subr.mxu0 0.0
    %236 = vmatpush2.msra.mxu0 0.0
    %237 = vmatprep.subr.mxu0 0.0
    %238 = vmatpush2.msra.mxu0 0.0
    %239 = vmatprep.subr.mxu0 0.0
    %240 = vmatpush2.msra.mxu0 0.0
    %241 = vmatprep.subr.mxu0 0.0
    %242 = vmatpush2.msra.mxu0 0.0
    %243 = vmatprep.subr.mxu0 0.0
    %244 = vmatpush2.msra.mxu0 0.0
    %245 = vmatprep.subr.mxu0 0.0
    %246 = vmatpush2.msra.mxu0 0.0
    %247 = vmatprep.subr.mxu0 0.0
    %248 = vmatpush2.msra.mxu0 0.0
    %249 = vmatprep.subr.mxu0 0.0
    %250 = vmatpush2.msra.mxu0 0.0
    %251 = vmatprep.subr.mxu0 0.0
    %252 = vmatpush2.msra.mxu0 0.0
    %253 = vmatprep.subr.mxu0 0.0
    %254 = vmatpush2.msra.mxu0 0.0
    %255 = vmatprep.subr.mxu0 0.0
    %256 = vmatpush2.msra.mxu0 0.0
    %257 = vmatprep.subr.mxu0 0.0
    %258 = vmatpush2.msra.mxu0 0.0
    %259 = vmatprep.subr.mxu0 0.0
    %260 = vmatpush2.msra.mxu0 0.0
    %261 = vmatprep.subr.mxu0 0.0
    %262 = vmatpush2.msra.mxu0 0.0
    %263 = vmatprep.subr.mxu0 0.0
    %264 = vmatpush2.msra.mxu0 0.0
    %265 = vmatprep.subr.mxu0 0.0
    %266 = vmatpush2.msra.mxu0 0.0
    %267 = vmatprep.mubr.f32.mxu0 0.0
    %268 = vmatmul.mubr.f32.gmra.mxu0 %v192
    %v269 = vpop.f32.mrf.mxu0
    %v270 = vadd.f32 %v173, %v269
    %v271 = vpop.f32.mrf.mxu0
    %272 = vmatprep.mubr.f32.mxu0 0.0
    %273 = vmatmul.mubr.f32.gmra.mxu0 %v195
    %v274 = vpop.f32.mrf.mxu0
    %v275 = vadd.f32 %v178, %v274
    %v276 = vpop.f32.mrf.mxu0
    %277 = vmatprep.mubr.f32.mxu0 0.0
    %278 = vmatmul.mubr.f32.gmra.mxu0 %v198
    %v279 = vpop.f32.mrf.mxu0
    %v280 = vadd.f32 %v183, %v279
    %v281 = vpop.f32.mrf.mxu0
    %282 = vmatprep.mubr.f32.mxu0 0.0
    %283 = vmatmul.mubr.f32.gmra.mxu0 %v201
    %v284 = vpop.f32.mrf.mxu0
    %v285 = vadd.f32 %v188, %v284
    %v286 = vpop.f32.mrf.mxu0
    %287 = vdwg.mxu0
    %v288 = vtanh.pop %v270
    %v289 = vtanh.pop %v275
    %v290 = vtanh.pop %v280
    %v291 = vtanh.pop %v285
    %v292 = vld [vmem:[%s5] sm:$0xff]
    %v293 = vld [vmem:[%s5 + $0x8] sm:$0xff]
    %v294 = vld [vmem:[%s5 + $0x10] sm:$0xff]
    %v295 = vld [vmem:[%s5 + $0x18] sm:$0xff]
    %297 = vset.pattern.permute.xlu0 0
    %298 = vperm.xlu0 %297, %v292
    %v299 = vpop.permute.xlu0 %298
    %302 = vset.pattern.permute.xlu0 0
    %303 = vperm.xlu0 %302, %v293
    %v304 = vpop.permute.xlu0 %303
    %307 = vset.pattern.permute.xlu0 0
    %308 = vperm.xlu0 %307, %v294
    %v309 = vpop.permute.xlu0 %308
    %312 = vset.pattern.permute.xlu0 0
    %313 = vperm.xlu0 %312, %v295
    %v314 = vpop.permute.xlu0 %313
    %v316 = vmul.f32 %v288, %v299
    %v317 = vmul.f32 %v289, %v304
    %v318 = vmul.f32 %v290, %v309
    %v319 = vmul.f32 %v291, %v314
    %vm320 = vcmask 64512
    %v321 = vsel %vm320, %v316, 0.0
    %v322 = vsel %vm320, %v317, 0.0
    %v323 = vadd.f32 %v321, %v322
    %v324 = vsel %vm320, %v318, 0.0
    %v325 = vadd.f32 %v323, %v324
    %v326 = vsel %vm320, %v319, 0.0
    %v327 = vadd.f32 %v325, %v326
    %v328 = vrot.slane %v327, 4
    %v329 = vadd.f32 %v327, %v328
    %v330 = vrot.slane %v329, 2
    %v331 = vadd.f32 %v329, %v330
    %v332 = vrot.slane %v331, 1
    %v333 = vadd.f32 %v331, %v332
    %s334 = sld [smem:[#allocation2]]
    %v335 = vstv %s334
    %v336 = vadd.f32 %v333, %v335
    %vm337 = vcmask 57344
    %338 = vst.msk [vmem:[#allocation3] sm:$0x1] %vm337, %v336
    // Predicated region
    $region30: #{mlp_value_forward.1} parent=1 // pred_check
      _
    $region31: #{mlp_value_forward.1} parent=1 // pred_check_branch
      %340 = sbr.rel (0) target = $region33
    $region32: #{mlp_value_forward.1} parent=1 // pred_region
      %s342 = ssub.s32 16, 16
      %343 = vsyncadd [#allocation4], %s342
      %s345 = sshll.u32 [#allocation3], 4
      %s346 = int_to_ptr.vmem [resolvable:$true] %s345
      %348 = dma.vmem_to_hbm [thread:$0]  %s346, 16, %s7, [#allocation4]
    $region33: #{mlp_value_forward.1} parent=1 // pred_fallthru
      _
    // Predicated region
    $region34: #{mlp_value_forward.1} parent=1 // pred_check
      _
    $region35: #{mlp_value_forward.1} parent=1 // pred_check_branch
      %350 = sbr.rel (0) target = $region37
    $region36: #{mlp_value_forward.1} parent=1 // pred_region
      %351 = dma.done [#allocation4], 16
    $region37: #{mlp_value_forward.1} parent=1 // pred_fallthru
      _
    %352 = vsyncpa [#allocation4], 1

</llo_original>
